<compile_context>
chip_gen: v7x
topology: tpu7x:2x2x1
jax: 0.10.0
libtpu: 0.0.40
codegen_flags: <defaults>
</compile_context>

<pallas_src>
import functools

import jax
import jax.numpy as jnp
from jax import lax
from jax.experimental import pallas as pl
from jax.experimental.pallas import tpu as pltpu


def _posenc_flat_kernel(pos_h_ref, pos_w_ref, inv_freq_ref, o_ref, *,
                        C, ch_half, n_freq):
    """o_ref: (tB, C, tL) block of the flattened (B, C, H*W) encoding."""
    tB, _, _ = o_ref.shape
    dt = o_ref.dtype

    inv_freq = inv_freq_ref[...]                     # (n_freq, 1) f32
    ang_h = pos_h_ref[...] * inv_freq                # (n_freq, tL)
    ang_w = pos_w_ref[...] * inv_freq                # (n_freq, tL)

    # Cast to output dtype at table size, assemble the whole channel axis with
    # one concatenate, and issue a single aligned full-block store per batch.
    parts = [jnp.sin(ang_h).astype(dt),
             jnp.cos(ang_h).astype(dt),
             jnp.sin(ang_w).astype(dt)]
    n_cos_w = C - ch_half - n_freq                   # n_freq, or n_freq-1 (odd C)
    if n_cos_w > 0:
        parts.append(jnp.cos(ang_w).astype(dt)[:n_cos_w])
    block = jnp.concatenate(parts, axis=0)           # (C, tL)

    for b in range(tB):                              # same vregs, tB stores
        o_ref[b] = block


def _posenc_nchw_kernel(inv_freq_ref, o_ref, *, C, ch_half, n_freq):
    """o_ref: (tB, C, tH, W) block of the NCHW encoding (W >= 128 path)."""
    tB, _, tH, W = o_ref.shape
    dt = o_ref.dtype

    inv_freq = inv_freq_ref[...]                                     # (n_freq,1,1)
    h0 = (pl.program_id(1) * tH).astype(jnp.float32)
    pos_h = h0 + lax.broadcasted_iota(jnp.float32, (1, tH, 1), 1)    # (1,tH,1)
    pos_w = lax.broadcasted_iota(jnp.float32, (1, 1, W), 2)          # (1,1,W)
    ang_h = pos_h * inv_freq                                         # (n_freq,tH,1)
    ang_w = pos_w * inv_freq                                         # (n_freq,1,W)

    # Separable: transcendentals only on the small tables, cast to the output
    # dtype before the (cheap lane/sublane) broadcast to full tile width.
    parts = [
        jnp.broadcast_to(jnp.sin(ang_h).astype(dt), (n_freq, tH, W)),
        jnp.broadcast_to(jnp.cos(ang_h).astype(dt), (n_freq, tH, W)),
        jnp.broadcast_to(jnp.sin(ang_w).astype(dt), (n_freq, tH, W)),
    ]
    n_cos_w = C - ch_half - n_freq
    if n_cos_w > 0:
        parts.append(jnp.broadcast_to(jnp.cos(ang_w).astype(dt)[:n_cos_w],
                                      (n_cos_w, tH, W)))
    block = jnp.concatenate(parts, axis=0)                           # (C,tH,W)

    for b in range(tB):
        o_ref[b] = block


def positional_encoding_permute_2d(x, *, max_block_bytes=4 << 20):
    """x: (B, C, H, W) NCHW.  Returns the positional encoding, same shape/dtype."""
    B, C, H, W = x.shape
    ch_half = -(-C // 2)         # ceil(C/2) == PositionalEncoding2D.channels
    n_freq = -(-ch_half // 2)    # len(inv_freq)
    if 2 * n_freq != ch_half:
        # The reference torch module itself fails (shape-mismatch assignment)
        # when ceil(C/2) is odd, so only the valid configurations are supported.
        raise ValueError("channels must satisfy: ceil(channels/2) is even")

    itemsize = jnp.dtype(x.dtype).itemsize
    cparams = pltpu.CompilerParams(
        dimension_semantics=(pltpu.PARALLEL, pltpu.PARALLEL))

    # Exactly the reference inv_freq expression (bit parity with the buffer).
    inv_freq = 1.0 / (10000.0 ** (
        jnp.arange(0, ch_half, 2, dtype=jnp.float32) / ch_half))     # (n_freq,)

    if W < 128:
        # ---- lane-dense flat path: (B, C, H*W), any W < 128 -------------------
        L = H * W
        slab = C * L * itemsize                      # one batch, full L
        if B * slab <= max_block_bytes:
            t_b, t_l = B, L
        elif slab <= max_block_bytes:
            t_b, t_l = max(1, min(B, max_block_bytes // slab)), L
        else:
            t_b = 1
            t_l = min(L, max(128, (max_block_bytes // (C * itemsize)) // 128 * 128))

        # Tiny index rows (split h/w in int32 first -> exact, then cast to f32).
        l_idx = jnp.arange(L, dtype=jnp.int32)
        pos_h = (l_idx // W).astype(jnp.float32)[None, :]            # (1, L)
        pos_w = (l_idx % W).astype(jnp.float32)[None, :]             # (1, L)

        kernel = functools.partial(_posenc_flat_kernel, C=C,
                                   ch_half=ch_half, n_freq=n_freq)
        out = pl.pallas_call(
            kernel,
            out_shape=jax.ShapeDtypeStruct((B, C, L), x.dtype),
            grid=(pl.cdiv(B, t_b), pl.cdiv(L, t_l)),
            in_specs=[
                pl.BlockSpec((1, t_l), lambda b, t: (0, t)),
                pl.BlockSpec((1, t_l), lambda b, t: (0, t)),
                pl.BlockSpec((n_freq, 1), lambda b, t: (0, 0)),
            ],
            out_specs=pl.BlockSpec((t_b, C, t_l), lambda b, t: (b, 0, t)),
            compiler_params=cparams,
        )(pos_h, pos_w, inv_freq.reshape(n_freq, 1))
        return out.reshape(B, C, H, W)

    # ---- W >= 128: rows already lane-dense; keep NCHW, tile batch / H ---------
    slab = C * H * W * itemsize
    if B * slab <= max_block_bytes:
        t_b, t_h = B, H
    elif slab <= max_block_bytes:
        t_b, t_h = max(1, min(B, max_block_bytes // slab)), H
    else:
        t_b = 1
        t_h = min(H, max(8, (max_block_bytes // (C * W * itemsize)) // 8 * 8))

    kernel = functools.partial(_posenc_nchw_kernel, C=C,
                               ch_half=ch_half, n_freq=n_freq)
    return pl.pallas_call(
        kernel,
        out_shape=jax.ShapeDtypeStruct((B, C, H, W), x.dtype),
        grid=(pl.cdiv(B, t_b), pl.cdiv(H, t_h)),
        in_specs=[pl.BlockSpec((n_freq, 1, 1), lambda b, h: (0, 0, 0))],
        out_specs=pl.BlockSpec((t_b, C, t_h, W), lambda b, h: (b, 0, h, 0)),
        compiler_params=cparams,
    )(inv_freq.reshape(n_freq, 1, 1))


def _reference(x):
    """Pure-JAX transcription of the PyTorch forward pass (for verification)."""
    B, C, H, W = x.shape
    ch = -(-C // 2)
    inv_freq = 1.0 / (10000.0 ** (jnp.arange(0, ch, 2, dtype=jnp.float32) / ch))
    sx = jnp.arange(H, dtype=jnp.float32)[:, None] * inv_freq[None, :]
    sy = jnp.arange(W, dtype=jnp.float32)[:, None] * inv_freq[None, :]
    emb_x = jnp.concatenate([jnp.sin(sx), jnp.cos(sx)], -1)[:, None, :]   # (H,1,ch)
    emb_y = jnp.concatenate([jnp.sin(sy), jnp.cos(sy)], -1)[None, :, :]   # (1,W,ch)
    emb = jnp.concatenate(
        [jnp.broadcast_to(emb_x, (H, W, ch)), jnp.broadcast_to(emb_y, (H, W, ch))],
        axis=-1)                                                           # (H,W,2ch)
    enc = jnp.broadcast_to(emb[None, :, :, :C], (B, H, W, C)).astype(x.dtype)
    return jnp.transpose(enc, (0, 3, 1, 2))                               # NCHW


if __name__ == "__main__":
    key = jax.random.PRNGKey(0)
    # (shape NCHW, dtype, wrapper kwargs): covers the flat lane-dense path
    # (pow-2 and non-pow-2 W), odd-channel truncation, batch folding with a
    # ragged batch tile, the W>=128 NCHW path, forced tiling with ragged final
    # blocks on both paths, and a bf16 output.
    cases = [
        ((2, 16, 16, 16), jnp.float32, {}),
        ((2, 7, 24, 16), jnp.float32, {}),
        ((2, 8, 10, 24), jnp.float32, {}),                              # W=24, non-pow-2
        ((1, 8, 16, 128), jnp.float32, {}),
        ((1, 8, 40, 16), jnp.float32, {"max_block_bytes": 8 * 1024}),    # flat, tiled L
        ((3, 8, 16, 16), jnp.float32, {"max_block_bytes": 16 * 1024}),   # tB=2, ragged B
        ((1, 8, 72, 128), jnp.float32, {"max_block_bytes": 64 * 1024}),  # NCHW, tiled H
        ((2, 16, 12, 20), jnp.bfloat16, {}),                             # bf16 output
    ]
    for shape, dtype, kwargs in cases:
        x = jax.random.normal(key, shape, dtype=jnp.float32).astype(dtype)
        out = jax.block_until_ready(positional_encoding_permute_2d(x, **kwargs))
        ref = _reference(x)
        assert out.shape == x.shape and out.dtype == x.dtype, shape
        tol = 1e-4 if dtype == jnp.float32 else 1e-2
        assert jnp.allclose(out.astype(jnp.float32), ref.astype(jnp.float32),
                            atol=tol, rtol=tol), f"mismatch for {shape} {dtype}"
    print("KERNEL_OK")
</pallas_src>

<mosaic_0001>
module attributes {stable_mosaic.version = 11 : i64} {
  func.func @_posenc_flat_kernel(%arg0: i32, %arg1: i32, %arg2: memref<1x256xf32, #tpu.memory_space<vmem>>, %arg3: memref<1x256xf32, #tpu.memory_space<vmem>>, %arg4: memref<4x1xf32, #tpu.memory_space<vmem>>, %arg5: memref<2x16x256xf32, #tpu.memory_space<vmem>>) attributes {dimension_semantics = [#tpu.dimension_semantics<parallel>, #tpu.dimension_semantics<parallel>], iteration_bounds = array<i64: 1, 1>, scalar_prefetch = 0 : i64, scratch_operands = 0 : i64, tpu.core_type = #tpu.core_type<tc>, window_params = [{transform_indices = @transform_0, window_bounds = array<i64: 1, 256>}, {transform_indices = @transform_1, window_bounds = array<i64: 1, 256>}, {pipeline_mode = #tpu.pipeline_mode<synchronous>, transform_indices = @transform_2, window_bounds = array<i64: 4, 1>}, {transform_indices = @transform_3, window_bounds = array<i64: 2, 16, 256>}]} {
    %c0 = arith.constant 0 : index
    %c0_0 = arith.constant 0 : index
    %0 = vector.load %arg4[%c0, %c0_0] : memref<4x1xf32, #tpu.memory_space<vmem>>, vector<4x1xf32>
    %c0_1 = arith.constant 0 : index
    %c0_2 = arith.constant 0 : index
    %1 = vector.load %arg2[%c0_1, %c0_2] : memref<1x256xf32, #tpu.memory_space<vmem>>, vector<1x256xf32>
    %2 = vector.broadcast %1 : vector<1x256xf32> to vector<4x256xf32>
    %3 = vector.broadcast %0 : vector<4x1xf32> to vector<4x256xf32>
    %4 = arith.mulf %2, %3 : vector<4x256xf32>
    %c0_3 = arith.constant 0 : index
    %c0_4 = arith.constant 0 : index
    %5 = vector.load %arg3[%c0_3, %c0_4] : memref<1x256xf32, #tpu.memory_space<vmem>>, vector<1x256xf32>
    %6 = vector.broadcast %5 : vector<1x256xf32> to vector<4x256xf32>
    %7 = vector.broadcast %0 : vector<4x1xf32> to vector<4x256xf32>
    %8 = arith.mulf %6, %7 : vector<4x256xf32>
    %9 = math.sin %4 : vector<4x256xf32>
    %10 = math.cos %4 : vector<4x256xf32>
    %11 = math.sin %8 : vector<4x256xf32>
    %12 = math.cos %8 : vector<4x256xf32>
    %13 = tpu.concatenate %9, %10, %11, %12 in 0 : vector<4x256xf32>, vector<4x256xf32>, vector<4x256xf32>, vector<4x256xf32> -> vector<16x256xf32>
    %c0_5 = arith.constant 0 : index
    %c0_6 = arith.constant 0 : index
    %c0_7 = arith.constant 0 : index
    %14 = vector.load %arg5[%c0_5, %c0_6, %c0_7] : memref<2x16x256xf32, #tpu.memory_space<vmem>>, vector<1x16x256xf32>
    %15 = vector.shape_cast %14 : vector<1x16x256xf32> to vector<16x256xf32>
    %16 = vector.shape_cast %13 : vector<16x256xf32> to vector<1x16x256xf32>
    tpu.vector_store %arg5[%c0_5, %c0_6, %c0_7], %16 {strides = array<i32>} : memref<2x16x256xf32, #tpu.memory_space<vmem>>, vector<1x16x256xf32>,
    %c1 = arith.constant 1 : index
    %c0_8 = arith.constant 0 : index
    %c0_9 = arith.constant 0 : index
    %17 = vector.load %arg5[%c1, %c0_8, %c0_9] : memref<2x16x256xf32, #tpu.memory_space<vmem>>, vector<1x16x256xf32>
    %18 = vector.shape_cast %17 : vector<1x16x256xf32> to vector<16x256xf32>
    %19 = vector.shape_cast %13 : vector<16x256xf32> to vector<1x16x256xf32>
    tpu.vector_store %arg5[%c1, %c0_8, %c0_9], %19 {strides = array<i32>} : memref<2x16x256xf32, #tpu.memory_space<vmem>>, vector<1x16x256xf32>,
    return
  }
  func.func @transform_0(%arg0: i32, %arg1: i32) -> (i32, i32) {
    %c0_i32 = arith.constant 0 : i32
    %c0_i32_0 = arith.constant 0 : i32
    return %c0_i32, %arg1 : i32, i32
  }
  func.func @transform_1(%arg0: i32, %arg1: i32) -> (i32, i32) {
    %c0_i32 = arith.constant 0 : i32
    %c0_i32_0 = arith.constant 0 : i32
    return %c0_i32, %arg1 : i32, i32
  }
  func.func @transform_2(%arg0: i32, %arg1: i32) -> (i32, i32) {
    %c0_i32 = arith.constant 0 : i32
    %c0_i32_0 = arith.constant 0 : i32
    %c0_i32_1 = arith.constant 0 : i32
    return %c0_i32, %c0_i32_0 : i32, i32
  }
  func.func @transform_3(%arg0: i32, %arg1: i32) -> (i32, i32, i32) {
    %c0_i32 = arith.constant 0 : i32
    %c0_i32_0 = arith.constant 0 : i32
    return %arg0, %c0_i32, %arg1 : i32, i32, i32
  }
}

</mosaic_0001>

<llo_original>
// kernel: tpu_custom_call.1
$region0: #{tpu_custom_call.1}
  #allocation0 [shape = 'u32[]', space=smem, size = 0x4, offset = 0x4, fixed_abs, tag = 'smem constant byte address 0x4 - core index']
  #allocation1 [shape = 'u32[144,128]{1,0:T(1,128)}', space=vmem, size = 0x12000, scoped, tag = 'internal scratch']
  %s0 = inlined_call_operand.vmem [shape: f32[1,256], index: 0, kind: input, shape index: {}]
  %s1 = inlined_call_operand.vmem [shape: f32[1,256], index: 1, kind: input, shape index: {}]
  %s2 = inlined_call_operand.vmem [shape: f32[4,1], index: 2, kind: input, shape index: {}]
  %s3 = inlined_call_operand.hbm [shape: f32[2,16,256], index: 3, kind: output, shape index: {}]
  %s4 = sld [smem:[#allocation0]]
  $region22: #{tpu_custom_call.1} parent=0
    _
  %s6 = ssub.s32 1, %s4
  %s7 = scalar_select 0, %s6, %s4
  $region1: #{tpu_custom_call.1} parent=0
    #allocation2 [shape = 'u8[32768]{0}', space=vmem, size = 0x8000, scoped, tag = 'output window, operand 0, single buffered']
    #allocation3 [shape = 's32[1]{0}', space=sflag, size = 0x4, scoped, tag = 'scoped memory for tpu_custom_call.1']
    %8 = vsyncpa [#allocation3], 0
    // Predicated region
    $region2: #{tpu_custom_call.1} parent=1 // pred_check
      _
    $region3: #{tpu_custom_call.1} parent=1 // pred_check_branch
      %10 = sbr.rel (0) target = $region5
    $region4: #{tpu_custom_call.1} parent=1 // pred_region
      _
    $region5: #{tpu_custom_call.1} parent=1 // pred_fallthru
      _
    // Predicated region
    $region6: #{tpu_custom_call.1} parent=1 // pred_check
      _
    $region7: #{tpu_custom_call.1} parent=1 // pred_check_branch
      %12 = sbr.rel (0) target = $region9
    $region8: #{tpu_custom_call.1} parent=1 // pred_region
      _
    $region9: #{tpu_custom_call.1} parent=1 // pred_fallthru
      _
    // Predicated region
    $region10: #{tpu_custom_call.1} parent=1 // pred_check
      _
    $region11: #{tpu_custom_call.1} parent=1 // pred_check_branch
      %14 = sbr.rel (0) target = $region13
    $region12: #{tpu_custom_call.1} parent=1 // pred_region
      _
    $region13: #{tpu_custom_call.1} parent=1 // pred_fallthru
      _
    %v15 = vld [vmem:[%s2] sm:$0xf]
    %v16 = vld [vmem:[%s0] sm:$0x3]
    %v18 = vlaneseq
    %v19 = vshrl.u32 %v18, 7
    %v20 = vsub.s32 0, %v19
    %v21 = vrot.slane %v16, %v20
    %v22 = vlaneseq
    %v23 = vshrl.u32 %v22, 7
    %v24 = vsub.s32 1, %v23
    %v25 = vrot.slane %v16, %v24
    %29 = vset.pattern.permute.xlu0 0
    %30 = vperm.xlu0 %29, %v15
    %v31 = vpop.permute.xlu0 %30
    %v33 = vmul.f32 %v21, %v31
    %v34 = vmul.f32 %v25, %v31
    %v35 = vld [vmem:[%s1] sm:$0x3]
    %v37 = vlaneseq
    %v38 = vshrl.u32 %v37, 7
    %v39 = vsub.s32 0, %v38
    %v40 = vrot.slane %v35, %v39
    %v41 = vlaneseq
    %v42 = vshrl.u32 %v41, 7
    %v43 = vsub.s32 1, %v42
    %v44 = vrot.slane %v35, %v43
    %v47 = vmul.f32 %v40, %v31
    %v48 = vmul.f32 %v44, %v31
    %v49 = vand.u32 2147483647, %v33
    %vm50 = vcmp.le.f32.partialorder %v49, 0.7853982
    %vm51 = vcmp.lt.s32.totalorder %v33, 0
    %v52 = vand.u32 %v33, 2139095040
    %v53 = vshrl.u32 %v52, 23
    %v54 = vsub.s32 %v53, 127
    %v55 = vand.u32 2147483647, %v33
    %v56 = vand.u32 %v55, 8388607
    %v57 = vor.u32 %v56, 8388608
    %v58 = vsub.s32 0, %v57
    %v59 = vadd.s32 %v54, 1
    %vm60 = vcmp.gt.s32.totalorder %v59, 0
    %v61 = vsel %vm60, %v59, 0
    %v62 = vshrl.u32 %v61, 5
    %v63 = vand.u32 %v61, 31
    %v64 = vsub.s32 32, %v63
    %v65 = vshrl.u32 683565275, %v64
    %v66 = vshll.u32 683565275, %v63
    %v67 = vshrl.u32 2475754826, %v64
    %v68 = vor.u32 %v66, %v67
    %v69 = vshll.u32 2475754826, %v63
    %v70 = vshrl.u32 2131351028, %v64
    %v71 = vor.u32 %v69, %v70
    %v72 = vshll.u32 2131351028, %v63
    %v73 = vshrl.u32 2102212464, %v64
    %v74 = vor.u32 %v72, %v73
    %v75 = vshll.u32 2102212464, %v63
    %v76 = vshrl.u32 920167782, %v64
    %v77 = vor.u32 %v75, %v76
    %v78 = vshll.u32 920167782, %v63
    %v79 = vshrl.u32 1326507024, %v64
    %v80 = vor.u32 %v78, %v79
    %vm81 = vcmp.lt.s32.totalorder %v62, 1
    %vm82 = vcmp.lt.s32.totalorder %v62, 2
    %vm83 = vcmp.lt.s32.totalorder %v62, 3
    %vm84 = vcmp.lt.s32.totalorder %v62, 4
    %v85 = vsel %vm81, %v65, %v68
    %v86 = vsel %vm84, %v74, 2102212464
    %v87 = vsel %vm83, %v71, %v86
    %v88 = vsel %vm82, %v85, %v87
    %v89 = vsel %vm81, %v68, %v71
    %v90 = vsel %vm84, %v77, 920167782
    %v91 = vsel %vm83, %v74, %v90
    %v92 = vsel %vm82, %v89, %v91
    %v93 = vsel %vm81, %v71, %v74
    %v94 = vsel %vm84, %v80, 1326507024
    %v95 = vsel %vm83, %v77, %v94
    %v96 = vsel %vm82, %v93, %v95
    %v97 = vshll.u32 %v57, 8
    %v98 = vmul.u32.u64.compose %v97, %v96
    %v99 = vextract.low.u32 %v98
    %v100 = vextract.high.u32 %v98
    %v101 = vmul.u32.u64.compose %v97, %v92
    %v102 = vextract.low.u32 %v101
    %v103 = vextract.high.u32 %v101
    %v104 = vmul.u32 %v97, %v88
    %v105 = vadd.s32 %v100, %v102
    %vm106 = vc.u32 %v100, %v102
    %v107 = vadd.s32 %v103, 1
    %v108 = vsel %vm106, %v107, %v103
    %v109 = vadd.s32 %v104, %v108
    %v110 = vadd.s32 %v109, 536870912
    %v111 = vshrl.u32 %v110, 30
    %v112 = vshll.u32 %v111, 30
    %v113 = vsub.s32 %v109, %v112
    %vm114 = vcmp.lt.s32.totalorder %v113, 0
    %v115 = vsub.s32 0, %v113
    %v116 = vsel %vm114, %v115, %v113
    %v117 = vclz %v116
    %v118 = vsub.s32 %v117, 2
    %vm119 = vcmp.gt.s32.totalorder 0, %v118
    %v120 = vsel %vm119, 0, %v118
    %v121 = vsub.s32 32, %v120
    %v122 = vshll.u32 %v113, %v120
    %v123 = vshrl.u32 %v105, %v121
    %v124 = vor.u32 %v122, %v123
    %v125 = vsub.s32 4294967266, %v120
    %v126 = vadd.s32 %v125, 127
    %v127 = vshll.u32 %v126, 23
    %v128 = vor.u32 4788187, %v127
    %v129 = vand.u32 2147483647, %v128
    %v131 = vcvt.s32.f32 %v124
    %v132 = vmul.f32 %v131, %v129
    %v133 = vxor.u32 %v132, 2147483648
    %v134 = vsel %vm51, %v133, %v132
    %v135 = vsub.s32 4, %v111
    %v136 = vsel %vm51, %v135, %v111
    %v137 = vsel %vm50, %v33, %v134
    %v138 = vsel %vm50, 0, %v136
    %v139 = vcosq.f32.pop %v137
    %v140 = vsinq.f32.pop %v137
    %vm141 = vweird.f32 %v33
    %v142 = vadd.s32 %v138, 3
    %v143 = vand.u32 %v142, 3
    %vm144 = vcmp.lt.s32.totalorder %v143, 2
    %vm145 = vcmp.eq.s32.totalorder %v143, 0
    %v146 = vxor.u32 %v140, 2147483648
    %v147 = vsel %vm145, %v139, %v146
    %vm148 = vcmp.eq.s32.totalorder %v143, 2
    %v149 = vxor.u32 %v139, 2147483648
    %v150 = vsel %vm148, %v149, %v140
    %v151 = vsel %vm144, %v147, %v150
    %v152 = vsel %vm141, nan, %v151
    %v153 = vand.u32 2147483647, %v34
    %vm154 = vcmp.le.f32.partialorder %v153, 0.7853982
    %vm155 = vcmp.lt.s32.totalorder %v34, 0
    %v156 = vand.u32 %v34, 2139095040
    %v157 = vshrl.u32 %v156, 23
    %v158 = vsub.s32 %v157, 127
    %v159 = vand.u32 2147483647, %v34
    %v160 = vand.u32 %v159, 8388607
    %v161 = vor.u32 %v160, 8388608
    %v162 = vsub.s32 0, %v161
    %v163 = vadd.s32 %v158, 1
    %vm164 = vcmp.gt.s32.totalorder %v163, 0
    %v165 = vsel %vm164, %v163, 0
    %v166 = vshrl.u32 %v165, 5
    %v167 = vand.u32 %v165, 31
    %v168 = vsub.s32 32, %v167
    %v169 = vshrl.u32 683565275, %v168
    %v170 = vshll.u32 683565275, %v167
    %v171 = vshrl.u32 2475754826, %v168
    %v172 = vor.u32 %v170, %v171
    %v173 = vshll.u32 2475754826, %v167
    %v174 = vshrl.u32 2131351028, %v168
    %v175 = vor.u32 %v173, %v174
    %v176 = vshll.u32 2131351028, %v167
    %v177 = vshrl.u32 2102212464, %v168
    %v178 = vor.u32 %v176, %v177
    %v179 = vshll.u32 2102212464, %v167
    %v180 = vshrl.u32 920167782, %v168
    %v181 = vor.u32 %v179, %v180
    %v182 = vshll.u32 920167782, %v167
    %v183 = vshrl.u32 1326507024, %v168
    %v184 = vor.u32 %v182, %v183
    %vm185 = vcmp.lt.s32.totalorder %v166, 1
    %vm186 = vcmp.lt.s32.totalorder %v166, 2
    %vm187 = vcmp.lt.s32.totalorder %v166, 3
    %vm188 = vcmp.lt.s32.totalorder %v166, 4
    %v189 = vsel %vm185, %v169, %v172
    %v190 = vsel %vm188, %v178, 2102212464
    %v191 = vsel %vm187, %v175, %v190
    %v192 = vsel %vm186, %v189, %v191
    %v193 = vsel %vm185, %v172, %v175
    %v194 = vsel %vm188, %v181, 920167782
    %v195 = vsel %vm187, %v178, %v194
    %v196 = vsel %vm186, %v193, %v195
    %v197 = vsel %vm185, %v175, %v178
    %v198 = vsel %vm188, %v184, 1326507024
    %v199 = vsel %vm187, %v181, %v198
    %v200 = vsel %vm186, %v197, %v199
    %v201 = vshll.u32 %v161, 8
    %v202 = vmul.u32.u64.compose %v201, %v200
    %v203 = vextract.low.u32 %v202
    %v204 = vextract.high.u32 %v202
    %v205 = vmul.u32.u64.compose %v201, %v196
    %v206 = vextract.low.u32 %v205
    %v207 = vextract.high.u32 %v205
    %v208 = vmul.u32 %v201, %v192
    %v209 = vadd.s32 %v204, %v206
    %vm210 = vc.u32 %v204, %v206
    %v211 = vadd.s32 %v207, 1
    %v212 = vsel %vm210, %v211, %v207
    %v213 = vadd.s32 %v208, %v212
    %v214 = vadd.s32 %v213, 536870912
    %v215 = vshrl.u32 %v214, 30
    %v216 = vshll.u32 %v215, 30
    %v217 = vsub.s32 %v213, %v216
    %vm218 = vcmp.lt.s32.totalorder %v217, 0
    %v219 = vsub.s32 0, %v217
    %v220 = vsel %vm218, %v219, %v217
    %v221 = vclz %v220
    %v222 = vsub.s32 %v221, 2
    %vm223 = vcmp.gt.s32.totalorder 0, %v222
    %v224 = vsel %vm223, 0, %v222
    %v225 = vsub.s32 32, %v224
    %v226 = vshll.u32 %v217, %v224
    %v227 = vshrl.u32 %v209, %v225
    %v228 = vor.u32 %v226, %v227
    %v229 = vsub.s32 4294967266, %v224
    %v230 = vadd.s32 %v229, 127
    %v231 = vshll.u32 %v230, 23
    %v232 = vor.u32 4788187, %v231
    %v233 = vand.u32 2147483647, %v232
    %v235 = vcvt.s32.f32 %v228
    %v236 = vmul.f32 %v235, %v233
    %v237 = vxor.u32 %v236, 2147483648
    %v238 = vsel %vm155, %v237, %v236
    %v239 = vsub.s32 4, %v215
    %v240 = vsel %vm155, %v239, %v215
    %v241 = vsel %vm154, %v34, %v238
    %v242 = vsel %vm154, 0, %v240
    %v243 = vcosq.f32.pop %v241
    %v244 = vsinq.f32.pop %v241
    %vm245 = vweird.f32 %v34
    %v246 = vadd.s32 %v242, 3
    %v247 = vand.u32 %v246, 3
    %vm248 = vcmp.lt.s32.totalorder %v247, 2
    %vm249 = vcmp.eq.s32.totalorder %v247, 0
    %v250 = vxor.u32 %v244, 2147483648
    %v251 = vsel %vm249, %v243, %v250
    %vm252 = vcmp.eq.s32.totalorder %v247, 2
    %v253 = vxor.u32 %v243, 2147483648
    %v254 = vsel %vm252, %v253, %v244
    %v255 = vsel %vm248, %v251, %v254
    %v256 = vsel %vm245, nan, %v255
    %v257 = vand.u32 2147483647, %v33
    %vm258 = vcmp.le.f32.partialorder %v257, 0.7853982
    %vm259 = vcmp.lt.s32.totalorder %v33, 0
    %v260 = vand.u32 %v33, 2139095040
    %v261 = vshrl.u32 %v260, 23
    %v262 = vsub.s32 %v261, 127
    %v263 = vand.u32 2147483647, %v33
    %v264 = vand.u32 %v263, 8388607
    %v265 = vor.u32 %v264, 8388608
    %v266 = vsub.s32 0, %v265
    %v267 = vadd.s32 %v262, 1
    %vm268 = vcmp.gt.s32.totalorder %v267, 0
    %v269 = vsel %vm268, %v267, 0
    %v270 = vshrl.u32 %v269, 5
    %v271 = vand.u32 %v269, 31
    %v272 = vsub.s32 32, %v271
    %v273 = vshrl.u32 683565275, %v272
    %v274 = vshll.u32 683565275, %v271
    %v275 = vshrl.u32 2475754826, %v272
    %v276 = vor.u32 %v274, %v275
    %v277 = vshll.u32 2475754826, %v271
    %v278 = vshrl.u32 2131351028, %v272
    %v279 = vor.u32 %v277, %v278
    %v280 = vshll.u32 2131351028, %v271
    %v281 = vshrl.u32 2102212464, %v272
    %v282 = vor.u32 %v280, %v281
    %v283 = vshll.u32 2102212464, %v271
    %v284 = vshrl.u32 920167782, %v272
    %v285 = vor.u32 %v283, %v284
    %v286 = vshll.u32 920167782, %v271
    %v287 = vshrl.u32 1326507024, %v272
    %v288 = vor.u32 %v286, %v287
    %vm289 = vcmp.lt.s32.totalorder %v270, 1
    %vm290 = vcmp.lt.s32.totalorder %v270, 2
    %vm291 = vcmp.lt.s32.totalorder %v270, 3
    %vm292 = vcmp.lt.s32.totalorder %v270, 4
    %v293 = vsel %vm289, %v273, %v276
    %v294 = vsel %vm292, %v282, 2102212464
    %v295 = vsel %vm291, %v279, %v294
    %v296 = vsel %vm290, %v293, %v295
    %v297 = vsel %vm289, %v276, %v279
    %v298 = vsel %vm292, %v285, 920167782
    %v299 = vsel %vm291, %v282, %v298
    %v300 = vsel %vm290, %v297, %v299
    %v301 = vsel %vm289, %v279, %v282
    %v302 = vsel %vm292, %v288, 1326507024
    %v303 = vsel %vm291, %v285, %v302
    %v304 = vsel %vm290, %v301, %v303
    %v305 = vshll.u32 %v265, 8
    %v306 = vmul.u32.u64.compose %v305, %v304
    %v307 = vextract.low.u32 %v306
    %v308 = vextract.high.u32 %v306
    %v309 = vmul.u32.u64.compose %v305, %v300
    %v310 = vextract.low.u32 %v309
    %v311 = vextract.high.u32 %v309
    %v312 = vmul.u32 %v305, %v296
    %v313 = vadd.s32 %v308, %v310
    %vm314 = vc.u32 %v308, %v310
    %v315 = vadd.s32 %v311, 1
    %v316 = vsel %vm314, %v315, %v311
    %v317 = vadd.s32 %v312, %v316
    %v318 = vadd.s32 %v317, 536870912
    %v319 = vshrl.u32 %v318, 30
    %v320 = vshll.u32 %v319, 30
    %v321 = vsub.s32 %v317, %v320
    %vm322 = vcmp.lt.s32.totalorder %v321, 0
    %v323 = vsub.s32 0, %v321
    %v324 = vsel %vm322, %v323, %v321
    %v325 = vclz %v324
    %v326 = vsub.s32 %v325, 2
    %vm327 = vcmp.gt.s32.totalorder 0, %v326
    %v328 = vsel %vm327, 0, %v326
    %v329 = vsub.s32 32, %v328
    %v330 = vshll.u32 %v321, %v328
    %v331 = vshrl.u32 %v313, %v329
    %v332 = vor.u32 %v330, %v331
    %v333 = vsub.s32 4294967266, %v328
    %v334 = vadd.s32 %v333, 127
    %v335 = vshll.u32 %v334, 23
    %v336 = vor.u32 4788187, %v335
    %v337 = vand.u32 2147483647, %v336
    %v339 = vcvt.s32.f32 %v332
    %v340 = vmul.f32 %v339, %v337
    %v341 = vxor.u32 %v340, 2147483648
    %v342 = vsel %vm259, %v341, %v340
    %v343 = vsub.s32 4, %v319
    %v344 = vsel %vm259, %v343, %v319
    %v345 = vsel %vm258, %v33, %v342
    %v346 = vsel %vm258, 0, %v344
    %v347 = vcosq.f32.pop %v345
    %v348 = vsinq.f32.pop %v345
    %vm349 = vweird.f32 %v33
    %v350 = vand.u32 %v346, 3
    %vm351 = vcmp.lt.s32.totalorder %v350, 2
    %vm352 = vcmp.eq.s32.totalorder %v350, 0
    %v353 = vxor.u32 %v348, 2147483648
    %v354 = vsel %vm352, %v347, %v353
    %vm355 = vcmp.eq.s32.totalorder %v350, 2
    %v356 = vxor.u32 %v347, 2147483648
    %v357 = vsel %vm355, %v356, %v348
    %v358 = vsel %vm351, %v354, %v357
    %v359 = vsel %vm349, nan, %v358
    %v360 = vand.u32 2147483647, %v34
    %vm361 = vcmp.le.f32.partialorder %v360, 0.7853982
    %vm362 = vcmp.lt.s32.totalorder %v34, 0
    %v363 = vand.u32 %v34, 2139095040
    %v364 = vshrl.u32 %v363, 23
    %v365 = vsub.s32 %v364, 127
    %v366 = vand.u32 2147483647, %v34
    %v367 = vand.u32 %v366, 8388607
    %v368 = vor.u32 %v367, 8388608
    %v369 = vsub.s32 0, %v368
    %v370 = vadd.s32 %v365, 1
    %vm371 = vcmp.gt.s32.totalorder %v370, 0
    %v372 = vsel %vm371, %v370, 0
    %v373 = vshrl.u32 %v372, 5
    %v374 = vand.u32 %v372, 31
    %v375 = vsub.s32 32, %v374
    %v376 = vshrl.u32 683565275, %v375
    %v377 = vshll.u32 683565275, %v374
    %v378 = vshrl.u32 2475754826, %v375
    %v379 = vor.u32 %v377, %v378
    %v380 = vshll.u32 2475754826, %v374
    %v381 = vshrl.u32 2131351028, %v375
    %v382 = vor.u32 %v380, %v381
    %v383 = vshll.u32 2131351028, %v374
    %v384 = vshrl.u32 2102212464, %v375
    %v385 = vor.u32 %v383, %v384
    %v386 = vshll.u32 2102212464, %v374
    %v387 = vshrl.u32 920167782, %v375
    %v388 = vor.u32 %v386, %v387
    %v389 = vshll.u32 920167782, %v374
    %v390 = vshrl.u32 1326507024, %v375
    %v391 = vor.u32 %v389, %v390
    %vm392 = vcmp.lt.s32.totalorder %v373, 1
    %vm393 = vcmp.lt.s32.totalorder %v373, 2
    %vm394 = vcmp.lt.s32.totalorder %v373, 3
    %vm395 = vcmp.lt.s32.totalorder %v373, 4
    %v396 = vsel %vm392, %v376, %v379
    %v397 = vsel %vm395, %v385, 2102212464
    %v398 = vsel %vm394, %v382, %v397
    %v399 = vsel %vm393, %v396, %v398
    %v400 = vsel %vm392, %v379, %v382
    %v401 = vsel %vm395, %v388, 920167782
    %v402 = vsel %vm394, %v385, %v401
    %v403 = vsel %vm393, %v400, %v402
    %v404 = vsel %vm392, %v382, %v385
    %v405 = vsel %vm395, %v391, 1326507024
    %v406 = vsel %vm394, %v388, %v405
    %v407 = vsel %vm393, %v404, %v406
    %v408 = vshll.u32 %v368, 8
    %v409 = vmul.u32.u64.compose %v408, %v407
    %v410 = vextract.low.u32 %v409
    %v411 = vextract.high.u32 %v409
    %v412 = vmul.u32.u64.compose %v408, %v403
    %v413 = vextract.low.u32 %v412
    %v414 = vextract.high.u32 %v412
    %v415 = vmul.u32 %v408, %v399
    %v416 = vadd.s32 %v411, %v413
    %vm417 = vc.u32 %v411, %v413
    %v418 = vadd.s32 %v414, 1
    %v419 = vsel %vm417, %v418, %v414
    %v420 = vadd.s32 %v415, %v419
    %v421 = vadd.s32 %v420, 536870912
    %v422 = vshrl.u32 %v421, 30
    %v423 = vshll.u32 %v422, 30
    %v424 = vsub.s32 %v420, %v423
    %vm425 = vcmp.lt.s32.totalorder %v424, 0
    %v426 = vsub.s32 0, %v424
    %v427 = vsel %vm425, %v426, %v424
    %v428 = vclz %v427
    %v429 = vsub.s32 %v428, 2
    %vm430 = vcmp.gt.s32.totalorder 0, %v429
    %v431 = vsel %vm430, 0, %v429
    %v432 = vsub.s32 32, %v431
    %v433 = vshll.u32 %v424, %v431
    %v434 = vshrl.u32 %v416, %v432
    %v435 = vor.u32 %v433, %v434
    %v436 = vsub.s32 4294967266, %v431
    %v437 = vadd.s32 %v436, 127
    %v438 = vshll.u32 %v437, 23
    %v439 = vor.u32 4788187, %v438
    %v440 = vand.u32 2147483647, %v439
    %v442 = vcvt.s32.f32 %v435
    %v443 = vmul.f32 %v442, %v440
    %v444 = vxor.u32 %v443, 2147483648
    %v445 = vsel %vm362, %v444, %v443
    %v446 = vsub.s32 4, %v422
    %v447 = vsel %vm362, %v446, %v422
    %v448 = vsel %vm361, %v34, %v445
    %v449 = vsel %vm361, 0, %v447
    %v450 = vcosq.f32.pop %v448
    %v451 = vsinq.f32.pop %v448
    %vm452 = vweird.f32 %v34
    %v453 = vand.u32 %v449, 3
    %vm454 = vcmp.lt.s32.totalorder %v453, 2
    %vm455 = vcmp.eq.s32.totalorder %v453, 0
    %v456 = vxor.u32 %v451, 2147483648
    %v457 = vsel %vm455, %v450, %v456
    %vm458 = vcmp.eq.s32.totalorder %v453, 2
    %v459 = vxor.u32 %v450, 2147483648
    %v460 = vsel %vm458, %v459, %v451
    %v461 = vsel %vm454, %v457, %v460
    %v462 = vsel %vm452, nan, %v461
    %v463 = vand.u32 2147483647, %v47
    %vm464 = vcmp.le.f32.partialorder %v463, 0.7853982
    %vm465 = vcmp.lt.s32.totalorder %v47, 0
    %v466 = vand.u32 %v47, 2139095040
    %v467 = vshrl.u32 %v466, 23
    %v468 = vsub.s32 %v467, 127
    %v469 = vand.u32 2147483647, %v47
    %v470 = vand.u32 %v469, 8388607
    %v471 = vor.u32 %v470, 8388608
    %v472 = vsub.s32 0, %v471
    %v473 = vadd.s32 %v468, 1
    %vm474 = vcmp.gt.s32.totalorder %v473, 0
    %v475 = vsel %vm474, %v473, 0
    %v476 = vshrl.u32 %v475, 5
    %v477 = vand.u32 %v475, 31
    %v478 = vsub.s32 32, %v477
    %v479 = vshrl.u32 683565275, %v478
    %v480 = vshll.u32 683565275, %v477
    %v481 = vshrl.u32 2475754826, %v478
    %v482 = vor.u32 %v480, %v481
    %v483 = vshll.u32 2475754826, %v477
    %v484 = vshrl.u32 2131351028, %v478
    %v485 = vor.u32 %v483, %v484
    %v486 = vshll.u32 2131351028, %v477
    %v487 = vshrl.u32 2102212464, %v478
    %v488 = vor.u32 %v486, %v487
    %v489 = vshll.u32 2102212464, %v477
    %v490 = vshrl.u32 920167782, %v478
    %v491 = vor.u32 %v489, %v490
    %v492 = vshll.u32 920167782, %v477
    %v493 = vshrl.u32 1326507024, %v478
    %v494 = vor.u32 %v492, %v493
    %vm495 = vcmp.lt.s32.totalorder %v476, 1
    %vm496 = vcmp.lt.s32.totalorder %v476, 2
    %vm497 = vcmp.lt.s32.totalorder %v476, 3
    %vm498 = vcmp.lt.s32.totalorder %v476, 4
    %v499 = vsel %vm495, %v479, %v482
    %v500 = vsel %vm498, %v488, 2102212464
    %v501 = vsel %vm497, %v485, %v500
    %v502 = vsel %vm496, %v499, %v501
    %v503 = vsel %vm495, %v482, %v485
    %v504 = vsel %vm498, %v491, 920167782
    %v505 = vsel %vm497, %v488, %v504
    %v506 = vsel %vm496, %v503, %v505
    %v507 = vsel %vm495, %v485, %v488
    %v508 = vsel %vm498, %v494, 1326507024
    %v509 = vsel %vm497, %v491, %v508
    %v510 = vsel %vm496, %v507, %v509
    %v511 = vshll.u32 %v471, 8
    %v512 = vmul.u32.u64.compose %v511, %v510
    %v513 = vextract.low.u32 %v512
    %v514 = vextract.high.u32 %v512
    %v515 = vmul.u32.u64.compose %v511, %v506
    %v516 = vextract.low.u32 %v515
    %v517 = vextract.high.u32 %v515
    %v518 = vmul.u32 %v511, %v502
    %v519 = vadd.s32 %v514, %v516
    %vm520 = vc.u32 %v514, %v516
    %v521 = vadd.s32 %v517, 1
    %v522 = vsel %vm520, %v521, %v517
    %v523 = vadd.s32 %v518, %v522
    %v524 = vadd.s32 %v523, 536870912
    %v525 = vshrl.u32 %v524, 30
    %v526 = vshll.u32 %v525, 30
    %v527 = vsub.s32 %v523, %v526
    %vm528 = vcmp.lt.s32.totalorder %v527, 0
    %v529 = vsub.s32 0, %v527
    %v530 = vsel %vm528, %v529, %v527
    %v531 = vclz %v530
    %v532 = vsub.s32 %v531, 2
    %vm533 = vcmp.gt.s32.totalorder 0, %v532
    %v534 = vsel %vm533, 0, %v532
    %v535 = vsub.s32 32, %v534
    %v536 = vshll.u32 %v527, %v534
    %v537 = vshrl.u32 %v519, %v535
    %v538 = vor.u32 %v536, %v537
    %v539 = vsub.s32 4294967266, %v534
    %v540 = vadd.s32 %v539, 127
    %v541 = vshll.u32 %v540, 23
    %v542 = vor.u32 4788187, %v541
    %v543 = vand.u32 2147483647, %v542
    %v545 = vcvt.s32.f32 %v538
    %v546 = vmul.f32 %v545, %v543
    %v547 = vxor.u32 %v546, 2147483648
    %v548 = vsel %vm465, %v547, %v546
    %v549 = vsub.s32 4, %v525
    %v550 = vsel %vm465, %v549, %v525
    %v551 = vsel %vm464, %v47, %v548
    %v552 = vsel %vm464, 0, %v550
    %v553 = vcosq.f32.pop %v551
    %v554 = vsinq.f32.pop %v551
    %vm555 = vweird.f32 %v47
    %v556 = vadd.s32 %v552, 3
    %v557 = vand.u32 %v556, 3
    %vm558 = vcmp.lt.s32.totalorder %v557, 2
    %vm559 = vcmp.eq.s32.totalorder %v557, 0
    %v560 = vxor.u32 %v554, 2147483648
    %v561 = vsel %vm559, %v553, %v560
    %vm562 = vcmp.eq.s32.totalorder %v557, 2
    %v563 = vxor.u32 %v553, 2147483648
    %v564 = vsel %vm562, %v563, %v554
    %v565 = vsel %vm558, %v561, %v564
    %v566 = vsel %vm555, nan, %v565
    %v567 = vand.u32 2147483647, %v48
    %vm568 = vcmp.le.f32.partialorder %v567, 0.7853982
    %vm569 = vcmp.lt.s32.totalorder %v48, 0
    %v570 = vand.u32 %v48, 2139095040
    %v571 = vshrl.u32 %v570, 23
    %v572 = vsub.s32 %v571, 127
    %v573 = vand.u32 2147483647, %v48
    %v574 = vand.u32 %v573, 8388607
    %v575 = vor.u32 %v574, 8388608
    %v576 = vsub.s32 0, %v575
    %v577 = vadd.s32 %v572, 1
    %vm578 = vcmp.gt.s32.totalorder %v577, 0
    %v579 = vsel %vm578, %v577, 0
    %v580 = vshrl.u32 %v579, 5
    %v581 = vand.u32 %v579, 31
    %v582 = vsub.s32 32, %v581
    %v583 = vshrl.u32 683565275, %v582
    %v584 = vshll.u32 683565275, %v581
    %v585 = vshrl.u32 2475754826, %v582
    %v586 = vor.u32 %v584, %v585
    %v587 = vshll.u32 2475754826, %v581
    %v588 = vshrl.u32 2131351028, %v582
    %v589 = vor.u32 %v587, %v588
    %v590 = vshll.u32 2131351028, %v581
    %v591 = vshrl.u32 2102212464, %v582
    %v592 = vor.u32 %v590, %v591
    %v593 = vshll.u32 2102212464, %v581
    %v594 = vshrl.u32 920167782, %v582
    %v595 = vor.u32 %v593, %v594
    %v596 = vshll.u32 920167782, %v581
    %v597 = vshrl.u32 1326507024, %v582
    %v598 = vor.u32 %v596, %v597
    %vm599 = vcmp.lt.s32.totalorder %v580, 1
    %vm600 = vcmp.lt.s32.totalorder %v580, 2
    %vm601 = vcmp.lt.s32.totalorder %v580, 3
    %vm602 = vcmp.lt.s32.totalorder %v580, 4
    %v603 = vsel %vm599, %v583, %v586
    %v604 = vsel %vm602, %v592, 2102212464
    %v605 = vsel %vm601, %v589, %v604
    %v606 = vsel %vm600, %v603, %v605
    %v607 = vsel %vm599, %v586, %v589
    %v608 = vsel %vm602, %v595, 920167782
    %v609 = vsel %vm601, %v592, %v608
    %v610 = vsel %vm600, %v607, %v609
    %v611 = vsel %vm599, %v589, %v592
    %v612 = vsel %vm602, %v598, 1326507024
    %v613 = vsel %vm601, %v595, %v612
    %v614 = vsel %vm600, %v611, %v613
    %v615 = vshll.u32 %v575, 8
    %v616 = vmul.u32.u64.compose %v615, %v614
    %v617 = vextract.low.u32 %v616
    %v618 = vextract.high.u32 %v616
    %v619 = vmul.u32.u64.compose %v615, %v610
    %v620 = vextract.low.u32 %v619
    %v621 = vextract.high.u32 %v619
    %v622 = vmul.u32 %v615, %v606
    %v623 = vadd.s32 %v618, %v620
    %vm624 = vc.u32 %v618, %v620
    %v625 = vadd.s32 %v621, 1
    %v626 = vsel %vm624, %v625, %v621
    %v627 = vadd.s32 %v622, %v626
    %v628 = vadd.s32 %v627, 536870912
    %v629 = vshrl.u32 %v628, 30
    %v630 = vshll.u32 %v629, 30
    %v631 = vsub.s32 %v627, %v630
    %vm632 = vcmp.lt.s32.totalorder %v631, 0
    %v633 = vsub.s32 0, %v631
    %v634 = vsel %vm632, %v633, %v631
    %v635 = vclz %v634
    %v636 = vsub.s32 %v635, 2
    %vm637 = vcmp.gt.s32.totalorder 0, %v636
    %v638 = vsel %vm637, 0, %v636
    %v639 = vsub.s32 32, %v638
    %v640 = vshll.u32 %v631, %v638
    %v641 = vshrl.u32 %v623, %v639
    %v642 = vor.u32 %v640, %v641
    %v643 = vsub.s32 4294967266, %v638
    %v644 = vadd.s32 %v643, 127
    %v645 = vshll.u32 %v644, 23
    %v646 = vor.u32 4788187, %v645
    %v647 = vand.u32 2147483647, %v646
    %v649 = vcvt.s32.f32 %v642
    %v650 = vmul.f32 %v649, %v647
    %v651 = vxor.u32 %v650, 2147483648
    %v652 = vsel %vm569, %v651, %v650
    %v653 = vsub.s32 4, %v629
    %v654 = vsel %vm569, %v653, %v629
    %v655 = vsel %vm568, %v48, %v652
    %v656 = vsel %vm568, 0, %v654
    %v657 = vcosq.f32.pop %v655
    %v658 = vsinq.f32.pop %v655
    %vm659 = vweird.f32 %v48
    %v660 = vadd.s32 %v656, 3
    %v661 = vand.u32 %v660, 3
    %vm662 = vcmp.lt.s32.totalorder %v661, 2
    %vm663 = vcmp.eq.s32.totalorder %v661, 0
    %v664 = vxor.u32 %v658, 2147483648
    %v665 = vsel %vm663, %v657, %v664
    %vm666 = vcmp.eq.s32.totalorder %v661, 2
    %v667 = vxor.u32 %v657, 2147483648
    %v668 = vsel %vm666, %v667, %v658
    %v669 = vsel %vm662, %v665, %v668
    %v670 = vsel %vm659, nan, %v669
    %v671 = vand.u32 2147483647, %v47
    %vm672 = vcmp.le.f32.partialorder %v671, 0.7853982
    %vm673 = vcmp.lt.s32.totalorder %v47, 0
    %v674 = vand.u32 %v47, 2139095040
    %v675 = vshrl.u32 %v674, 23
    %v676 = vsub.s32 %v675, 127
    %v677 = vand.u32 2147483647, %v47
    %v678 = vand.u32 %v677, 8388607
    %v679 = vor.u32 %v678, 8388608
    %v680 = vsub.s32 0, %v679
    %v681 = vadd.s32 %v676, 1
    %vm682 = vcmp.gt.s32.totalorder %v681, 0
    %v683 = vsel %vm682, %v681, 0
    %v684 = vshrl.u32 %v683, 5
    %v685 = vand.u32 %v683, 31
    %v686 = vsub.s32 32, %v685
    %v687 = vshrl.u32 683565275, %v686
    %v688 = vshll.u32 683565275, %v685
    %v689 = vshrl.u32 2475754826, %v686
    %v690 = vor.u32 %v688, %v689
    %v691 = vshll.u32 2475754826, %v685
    %v692 = vshrl.u32 2131351028, %v686
    %v693 = vor.u32 %v691, %v692
    %v694 = vshll.u32 2131351028, %v685
    %v695 = vshrl.u32 2102212464, %v686
    %v696 = vor.u32 %v694, %v695
    %v697 = vshll.u32 2102212464, %v685
    %v698 = vshrl.u32 920167782, %v686
    %v699 = vor.u32 %v697, %v698
    %v700 = vshll.u32 920167782, %v685
    %v701 = vshrl.u32 1326507024, %v686
    %v702 = vor.u32 %v700, %v701
    %vm703 = vcmp.lt.s32.totalorder %v684, 1
    %vm704 = vcmp.lt.s32.totalorder %v684, 2
    %vm705 = vcmp.lt.s32.totalorder %v684, 3
    %vm706 = vcmp.lt.s32.totalorder %v684, 4
    %v707 = vsel %vm703, %v687, %v690
    %v708 = vsel %vm706, %v696, 2102212464
    %v709 = vsel %vm705, %v693, %v708
    %v710 = vsel %vm704, %v707, %v709
    %v711 = vsel %vm703, %v690, %v693
    %v712 = vsel %vm706, %v699, 920167782
    %v713 = vsel %vm705, %v696, %v712
    %v714 = vsel %vm704, %v711, %v713
    %v715 = vsel %vm703, %v693, %v696
    %v716 = vsel %vm706, %v702, 1326507024
    %v717 = vsel %vm705, %v699, %v716
    %v718 = vsel %vm704, %v715, %v717
    %v719 = vshll.u32 %v679, 8
    %v720 = vmul.u32.u64.compose %v719, %v718
    %v721 = vextract.low.u32 %v720
    %v722 = vextract.high.u32 %v720
    %v723 = vmul.u32.u64.compose %v719, %v714
    %v724 = vextract.low.u32 %v723
    %v725 = vextract.high.u32 %v723
    %v726 = vmul.u32 %v719, %v710
    %v727 = vadd.s32 %v722, %v724
    %vm728 = vc.u32 %v722, %v724
    %v729 = vadd.s32 %v725, 1
    %v730 = vsel %vm728, %v729, %v725
    %v731 = vadd.s32 %v726, %v730
    %v732 = vadd.s32 %v731, 536870912
    %v733 = vshrl.u32 %v732, 30
    %v734 = vshll.u32 %v733, 30
    %v735 = vsub.s32 %v731, %v734
    %vm736 = vcmp.lt.s32.totalorder %v735, 0
    %v737 = vsub.s32 0, %v735
    %v738 = vsel %vm736, %v737, %v735
    %v739 = vclz %v738
    %v740 = vsub.s32 %v739, 2
    %vm741 = vcmp.gt.s32.totalorder 0, %v740
    %v742 = vsel %vm741, 0, %v740
    %v743 = vsub.s32 32, %v742
    %v744 = vshll.u32 %v735, %v742
    %v745 = vshrl.u32 %v727, %v743
    %v746 = vor.u32 %v744, %v745
    %v747 = vsub.s32 4294967266, %v742
    %v748 = vadd.s32 %v747, 127
    %v749 = vshll.u32 %v748, 23
    %v750 = vor.u32 4788187, %v749
    %v751 = vand.u32 2147483647, %v750
    %v753 = vcvt.s32.f32 %v746
    %v754 = vmul.f32 %v753, %v751
    %v755 = vxor.u32 %v754, 2147483648
    %v756 = vsel %vm673, %v755, %v754
    %v757 = vsub.s32 4, %v733
    %v758 = vsel %vm673, %v757, %v733
    %v759 = vsel %vm672, %v47, %v756
    %v760 = vsel %vm672, 0, %v758
    %v761 = vcosq.f32.pop %v759
    %v762 = vsinq.f32.pop %v759
    %vm763 = vweird.f32 %v47
    %v764 = vand.u32 %v760, 3
    %vm765 = vcmp.lt.s32.totalorder %v764, 2
    %vm766 = vcmp.eq.s32.totalorder %v764, 0
    %v767 = vxor.u32 %v762, 2147483648
    %v768 = vsel %vm766, %v761, %v767
    %vm769 = vcmp.eq.s32.totalorder %v764, 2
    %v770 = vxor.u32 %v761, 2147483648
    %v771 = vsel %vm769, %v770, %v762
    %v772 = vsel %vm765, %v768, %v771
    %v773 = vsel %vm763, nan, %v772
    %v774 = vand.u32 2147483647, %v48
    %vm775 = vcmp.le.f32.partialorder %v774, 0.7853982
    %vm776 = vcmp.lt.s32.totalorder %v48, 0
    %v777 = vand.u32 %v48, 2139095040
    %v778 = vshrl.u32 %v777, 23
    %v779 = vsub.s32 %v778, 127
    %v780 = vand.u32 2147483647, %v48
    %v781 = vand.u32 %v780, 8388607
    %v782 = vor.u32 %v781, 8388608
    %v783 = vsub.s32 0, %v782
    %v784 = vadd.s32 %v779, 1
    %vm785 = vcmp.gt.s32.totalorder %v784, 0
    %v786 = vsel %vm785, %v784, 0
    %v787 = vshrl.u32 %v786, 5
    %v788 = vand.u32 %v786, 31
    %v789 = vsub.s32 32, %v788
    %v790 = vshrl.u32 683565275, %v789
    %v791 = vshll.u32 683565275, %v788
    %v792 = vshrl.u32 2475754826, %v789
    %v793 = vor.u32 %v791, %v792
    %v794 = vshll.u32 2475754826, %v788
    %v795 = vshrl.u32 2131351028, %v789
    %v796 = vor.u32 %v794, %v795
    %v797 = vshll.u32 2131351028, %v788
    %v798 = vshrl.u32 2102212464, %v789
    %v799 = vor.u32 %v797, %v798
    %v800 = vshll.u32 2102212464, %v788
    %v801 = vshrl.u32 920167782, %v789
    %v802 = vor.u32 %v800, %v801
    %v803 = vshll.u32 920167782, %v788
    %v804 = vshrl.u32 1326507024, %v789
    %v805 = vor.u32 %v803, %v804
    %vm806 = vcmp.lt.s32.totalorder %v787, 1
    %vm807 = vcmp.lt.s32.totalorder %v787, 2
    %vm808 = vcmp.lt.s32.totalorder %v787, 3
    %vm809 = vcmp.lt.s32.totalorder %v787, 4
    %v810 = vsel %vm806, %v790, %v793
    %v811 = vsel %vm809, %v799, 2102212464
    %v812 = vsel %vm808, %v796, %v811
    %v813 = vsel %vm807, %v810, %v812
    %v814 = vsel %vm806, %v793, %v796
    %v815 = vsel %vm809, %v802, 920167782
    %v816 = vsel %vm808, %v799, %v815
    %v817 = vsel %vm807, %v814, %v816
    %v818 = vsel %vm806, %v796, %v799
    %v819 = vsel %vm809, %v805, 1326507024
    %v820 = vsel %vm808, %v802, %v819
    %v821 = vsel %vm807, %v818, %v820
    %v822 = vshll.u32 %v782, 8
    %v823 = vmul.u32.u64.compose %v822, %v821
    %v824 = vextract.low.u32 %v823
    %v825 = vextract.high.u32 %v823
    %v826 = vmul.u32.u64.compose %v822, %v817
    %v827 = vextract.low.u32 %v826
    %v828 = vextract.high.u32 %v826
    %v829 = vmul.u32 %v822, %v813
    %v830 = vadd.s32 %v825, %v827
    %vm831 = vc.u32 %v825, %v827
    %v832 = vadd.s32 %v828, 1
    %v833 = vsel %vm831, %v832, %v828
    %v834 = vadd.s32 %v829, %v833
    %v835 = vadd.s32 %v834, 536870912
    %v836 = vshrl.u32 %v835, 30
    %v837 = vshll.u32 %v836, 30
    %v838 = vsub.s32 %v834, %v837
    %vm839 = vcmp.lt.s32.totalorder %v838, 0
    %v840 = vsub.s32 0, %v838
    %v841 = vsel %vm839, %v840, %v838
    %v842 = vclz %v841
    %v843 = vsub.s32 %v842, 2
    %vm844 = vcmp.gt.s32.totalorder 0, %v843
    %v845 = vsel %vm844, 0, %v843
    %v846 = vsub.s32 32, %v845
    %v847 = vshll.u32 %v838, %v845
    %v848 = vshrl.u32 %v830, %v846
    %v849 = vor.u32 %v847, %v848
    %v850 = vsub.s32 4294967266, %v845
    %v851 = vadd.s32 %v850, 127
    %v852 = vshll.u32 %v851, 23
    %v853 = vor.u32 4788187, %v852
    %v854 = vand.u32 2147483647, %v853
    %v856 = vcvt.s32.f32 %v849
    %v857 = vmul.f32 %v856, %v854
    %v858 = vxor.u32 %v857, 2147483648
    %v859 = vsel %vm776, %v858, %v857
    %v860 = vsub.s32 4, %v836
    %v861 = vsel %vm776, %v860, %v836
    %v862 = vsel %vm775, %v48, %v859
    %v863 = vsel %vm775, 0, %v861
    %v864 = vcosq.f32.pop %v862
    %v865 = vsinq.f32.pop %v862
    %vm866 = vweird.f32 %v48
    %v867 = vand.u32 %v863, 3
    %vm868 = vcmp.lt.s32.totalorder %v867, 2
    %vm869 = vcmp.eq.s32.totalorder %v867, 0
    %v870 = vxor.u32 %v865, 2147483648
    %v871 = vsel %vm869, %v864, %v870
    %vm872 = vcmp.eq.s32.totalorder %v867, 2
    %v873 = vxor.u32 %v864, 2147483648
    %v874 = vsel %vm872, %v873, %v865
    %v875 = vsel %vm868, %v871, %v874
    %v876 = vsel %vm866, nan, %v875
    %v879 = vrot.slane %v359, 4
    %v880 = vrot.slane %v462, 4
    %v885 = vrot.slane %v773, 4
    %v886 = vrot.slane %v876, 4
    %vm889 = vcmask 1043456
    %v890 = vsel %vm889, %v152, %v879
    %v891 = vsel %vm889, %v256, %v880
    %v892 = vsel %vm889, %v566, %v885
    %v893 = vsel %vm889, %v670, %v886
    %894 = vst [vmem:[#allocation2] sm:$0xff] %v890
    %895 = vst [vmem:[#allocation2 + $0x8] sm:$0xff] %v891
    %896 = vst [vmem:[#allocation2 + $0x10] sm:$0xff] %v892
    %897 = vst [vmem:[#allocation2 + $0x18] sm:$0xff] %v893
    %s898 = scalar_lea.vmem [#allocation2], 32
    %899 = vst [vmem:[%s898] sm:$0xff] %v890
    %900 = vst [vmem:[%s898 + $0x8] sm:$0xff] %v891
    %901 = vst [vmem:[%s898 + $0x10] sm:$0xff] %v892
    %902 = vst [vmem:[%s898 + $0x18] sm:$0xff] %v893
    // Predicated region
    $region14: #{tpu_custom_call.1} parent=1 // pred_check
      _
    $region15: #{tpu_custom_call.1} parent=1 // pred_check_branch
      %904 = sbr.rel (0) target = $region17
    $region16: #{tpu_custom_call.1} parent=1 // pred_region
      %s906 = ssub.s32 1024, 1024
      %907 = vsyncadd [#allocation3], %s906
      %s908 = sshll.u32 [#allocation2], 4
      %s909 = int_to_ptr.vmem [resolvable:$true] %s908
      %914 = dma.vmem_to_hbm [thread:$0]  %s909, 1024, %s3, [#allocation3], 256, 256, 16
    $region17: #{tpu_custom_call.1} parent=1 // pred_fallthru
      _
    // Predicated region
    $region18: #{tpu_custom_call.1} parent=1 // pred_check
      _
    $region19: #{tpu_custom_call.1} parent=1 // pred_check_branch
      %916 = sbr.rel (0) target = $region21
    $region20: #{tpu_custom_call.1} parent=1 // pred_region
      %917 = dma.done [#allocation3], 1024
    $region21: #{tpu_custom_call.1} parent=1 // pred_fallthru
      _
    %918 = vsyncpa [#allocation3], 1

</llo_original>
